<compile_context>
chip_gen: v5e
topology: v5e:2x2
jax: 0.10.0
libtpu: 0.0.40
codegen_flags: <defaults>
</compile_context>

<pallas_src>
import functools

import numpy as np
import jax
import jax.numpy as jnp
from jax.experimental import pallas as pl
from jax.experimental.pallas import tpu as pltpu


# -----------------------------------------------------------------------------
# Fused forward kernel.
# -----------------------------------------------------------------------------
def _fused_vae_kernel(
    # row-tiled inputs
    x_ref, eps1_ref, eps2_ref,
    # encoder_z1 (q(z1|x)): Linear -> ReLU -> fused [mean|logvar] head
    e1_w1_ref, e1_b1_ref, e1_head_ref, e1_head_b_ref,
    # encoder_z2_z1 (q(z2|z1,c)): first layer split into z-part / one-hot rows
    e2_w1z_ref, e2_w1y_ref, e2_b1_ref, e2_head_ref, e2_head_b_ref,
    # decoder_z1_z2 (p(z1|z2,c)): same split
    d1_w1z_ref, d1_w1y_ref, d1_b1_ref, d1_head_ref, d1_head_b_ref,
    # fused classifier q(c|z1) + Bernoulli x-decoder p(x|z1) head
    cls_xd_w_ref, cls_xd_b_ref,
    # output: one (8,128) block per tile holding the tile's scalar partial sum
    out_ref,
    *, n_cat, n_latent, n_rows, tile_rows, log_pc):
  f32 = jnp.float32
  bf16 = jnp.bfloat16
  L = n_latent
  TR = tile_rows
  M = n_cat * TR

  x = x_ref[...]                       # (TR, NI) f32 (binary data)
  eps1 = eps1_ref[...]                 # (TR, L)  f32
  eps2 = eps2_ref[0]                   # (M, L)   f32, category-major rows

  # ---- q(z1 | x): Linear -> ReLU -> fused [mean | logvar] head ---------------
  h1 = jnp.maximum(
      jnp.dot(x.astype(bf16), e1_w1_ref[...], preferred_element_type=f32)
      + e1_b1_ref[...], 0.0)                                            # (TR, H)
  mv1 = (jnp.dot(h1.astype(bf16), e1_head_ref[...], preferred_element_type=f32)
         + e1_head_b_ref[...])                                          # (TR, 2L)
  qm1, qlv1 = mv1[:, :L], mv1[:, L:]
  z1 = qm1 + jnp.exp(0.5 * qlv1) * eps1                                 # (TR, L)
  z1b = z1.astype(bf16)

  # -log q(z1|x) with the 0.5*log(2pi) constant dropped (cancels in log_ratio);
  # (z1 - m)^2 / v == eps^2 exactly.
  neg_log_qz1 = jnp.sum(0.5 * eps1 * eps1 + 0.5 * qlv1, axis=-1, keepdims=True)

  # ---- fused classifier + Bernoulli x-decoder heads (both consume z1) --------
  cx = (jnp.dot(z1b, cls_xd_w_ref[...], preferred_element_type=f32)
        + cls_xd_b_ref[...])                                            # (TR, C+NI)
  c_logits = cx[:, :n_cat]
  x_logits = cx[:, n_cat:]

  c_sh = c_logits - jnp.max(c_logits, axis=-1, keepdims=True)
  log_qc = c_sh - jnp.log(jnp.sum(jnp.exp(c_sh), axis=-1, keepdims=True))
  qc = jnp.exp(log_qc)                                                  # (TR, C)

  softplus = jnp.maximum(x_logits, 0.0) + jnp.log(1.0 + jnp.exp(-jnp.abs(x_logits)))
  log_px_z = jnp.sum(x * x_logits - softplus, axis=-1, keepdims=True)   # (TR, 1)

  # ---- q(z2 | z1, c): all categories batched along M = n_cat*TR --------------
  # concat([z1, onehot(c)]) @ W1  ==  z1 @ W1[:L]  +  W1[L+c]
  pre_q = (jnp.dot(z1b, e2_w1z_ref[...], preferred_element_type=f32)
           + e2_b1_ref[...])                                            # (TR, H)
  h2 = jnp.maximum(pre_q[None, :, :] + e2_w1y_ref[...][:, None, :], 0.0)
  h2 = h2.reshape(M, h2.shape[-1])                                      # (M, H)
  mv2 = (jnp.dot(h2.astype(bf16), e2_head_ref[...], preferred_element_type=f32)
         + e2_head_b_ref[...])                                          # (M, 2L)
  qm2, qlv2 = mv2[:, :L], mv2[:, L:]
  z2 = qm2 + jnp.exp(0.5 * qlv2) * eps2                                 # (M, L)

  # ---- p(z1 | z2, c): same category-batched layout ---------------------------
  pre_d = (jnp.dot(z2.astype(bf16), d1_w1z_ref[...], preferred_element_type=f32)
           + d1_b1_ref[...])                                            # (M, H)
  h3 = jnp.maximum(pre_d.reshape(n_cat, TR, pre_d.shape[-1])
                   + d1_w1y_ref[...][:, None, :], 0.0)
  h3 = h3.reshape(M, h3.shape[-1])
  mv3 = (jnp.dot(h3.astype(bf16), d1_head_ref[...], preferred_element_type=f32)
         + d1_head_b_ref[...])                                          # (M, 2L)
  pm, plv = mv3[:, :L], mv3[:, L:]

  z1_all = jnp.broadcast_to(z1[None, :, :], (n_cat, TR, L)).reshape(M, L)
  diff = z1_all - pm

  # Per-category term [log p(z2) - log q(z2|z1,c)] + log p(z1|z2,c), constants
  # dropped (exact cancellation), all folded into ONE fused lane reduction.
  summand = (-0.5 * z2 * z2 + 0.5 * eps2 * eps2 + 0.5 * qlv2
             - 0.5 * diff * diff * jnp.exp(-plv) - 0.5 * plv)
  t_cat = jnp.sum(summand, axis=-1, keepdims=True)                      # (M, 1)

  # ---- qc-weighted combine ----------------------------------------------------
  # sum_c qc*log_ratio_c = sum_c qc*(t_c + log_pc - log_qc) + (log_px - log_qz1)
  ent = jnp.sum(qc * (log_pc - log_qc), axis=-1, keepdims=True)         # (TR, 1)
  cross = jnp.zeros((TR, 1), f32)
  for c in range(n_cat):                 # tiny static unroll; VPU FMAs only
    cross = cross + qc[:, c:c + 1] * t_cat[c * TR:(c + 1) * TR, :]

  row_val = log_px_z + neg_log_qz1 + ent + cross                        # (TR, 1)

  # Mask padded rows and pre-reduce to one scalar per tile (tiny HBM writeback).
  row0 = pl.program_id(0) * TR
  row_ids = row0 + jax.lax.broadcasted_iota(jnp.int32, (TR, 1), 0)
  valid = (row_ids < n_rows).astype(f32)
  tile_total = jnp.sum(row_val * valid, axis=0, keepdims=True)          # (1, 1)
  out_ref[...] = jnp.broadcast_to(tile_total, (8, 128))


# -----------------------------------------------------------------------------
# Parameter init (deterministic, PyTorch nn.Linear-style uniform bounds).
# -----------------------------------------------------------------------------
def _linear_init(key, din, dout):
  kw, kb = jax.random.split(key)
  bound = 1.0 / float(np.sqrt(din))
  w = jax.random.uniform(kw, (din, dout), jnp.float32, -bound, bound)
  b = jax.random.uniform(kb, (1, dout), jnp.float32, -bound, bound)
  return w, b


def _gauss_mlp_init(key, din, dhidden, dout):
  k1, k2, k3 = jax.random.split(key, 3)
  w1, b1 = _linear_init(k1, din, dhidden)
  wm, bm = _linear_init(k2, dhidden, dout)
  wv, bv = _linear_init(k3, dhidden, dout)
  return dict(w1=w1, b1=b1, wm=wm, bm=bm, wv=wv, bv=bv)


def init_params(key, n_input, n_labels, n_hidden, n_latent):
  k1, k2, k3, k4, k5 = jax.random.split(key, 5)
  wc, bc = _linear_init(k4, n_latent, n_labels)
  wx, bx = _linear_init(k5, n_latent, n_input)
  return dict(
      encoder_z1=_gauss_mlp_init(k1, n_input, n_hidden, n_latent),
      encoder_z2_z1=_gauss_mlp_init(k2, n_latent + n_labels, n_hidden, n_latent),
      decoder_z1_z2=_gauss_mlp_init(k3, n_latent + n_labels, n_hidden, n_latent),
      classifier=dict(w=wc, b=bc),
      x_decoder=dict(w=wx, b=bx),
  )


def _round_up(v, m):
  return (v + m - 1) // m * m


def _pick_tile_rows(n_rows):
  # Largest tile (<=512, multiple of 8) that still yields >= 2 grid steps so the
  # "parallel" row axis can shard across both v7x TensorCores; fall back to 8.
  for t in (512, 256, 128, 64, 32, 16, 8):
    if _round_up(n_rows, t) // t >= 2:
      return t
  return 8


# -----------------------------------------------------------------------------
# Forward pass (SemiSupervisedVAE.forward with y=None, loss_type='ELBO').
# -----------------------------------------------------------------------------
@functools.partial(jax.jit, static_argnames=("n_samples",))
def semi_supervised_vae_forward(x, params, key, n_samples=1):
  n_batch, n_input = x.shape
  n_latent = params["encoder_z1"]["wm"].shape[1]
  n_cat = params["classifier"]["w"].shape[1]

  R = n_samples * n_batch
  tile_rows = _pick_tile_rows(R)
  R_pad = _round_up(R, tile_rows)
  num_tiles = R_pad // tile_rows

  k1, k2 = jax.random.split(key)
  # Reparameterization noise (padded rows masked in-kernel). eps2 is laid out
  # per-tile-contiguous and category-major: (num_tiles, n_cat*tile_rows, L).
  eps1 = jax.random.normal(k1, (R_pad, n_latent), jnp.float32)
  eps2 = jax.random.normal(k2, (num_tiles, n_cat * tile_rows, n_latent), jnp.float32)

  # rows = flattened (n_samples, n_batch); x repeated across samples.
  x_rows = jnp.broadcast_to(x[None], (n_samples, n_batch, n_input)).reshape(R, n_input)
  x_rows = jnp.pad(x_rows, ((0, R_pad - R), (0, 0)))

  e1 = params["encoder_z1"]
  e2 = params["encoder_z2_z1"]
  d1 = params["decoder_z1_z2"]
  cls = params["classifier"]
  xd = params["x_decoder"]

  bf16 = jnp.bfloat16
  # Fused [mean|logvar] heads and [classifier|x-decoder] head. Matmul weights are
  # cast to bf16 (f32 accumulation on the MXU); biases / one-hot rows stay f32.
  e1_w1 = e1["w1"].astype(bf16)
  e1_head = jnp.concatenate([e1["wm"], e1["wv"]], axis=1).astype(bf16)
  e1_head_b = jnp.concatenate([e1["bm"], e1["bv"]], axis=1)
  e2_w1z = e2["w1"][:n_latent, :].astype(bf16)
  e2_w1y = e2["w1"][n_latent:, :]
  e2_head = jnp.concatenate([e2["wm"], e2["wv"]], axis=1).astype(bf16)
  e2_head_b = jnp.concatenate([e2["bm"], e2["bv"]], axis=1)
  d1_w1z = d1["w1"][:n_latent, :].astype(bf16)
  d1_w1y = d1["w1"][n_latent:, :]
  d1_head = jnp.concatenate([d1["wm"], d1["wv"]], axis=1).astype(bf16)
  d1_head_b = jnp.concatenate([d1["bm"], d1["bv"]], axis=1)
  cls_xd_w = jnp.concatenate([cls["w"], xd["w"]], axis=1).astype(bf16)
  cls_xd_b = jnp.concatenate([cls["b"], xd["b"]], axis=1)

  weights = (
      e1_w1, e1["b1"], e1_head, e1_head_b,
      e2_w1z, e2_w1y, e2["b1"], e2_head, e2_head_b,
      d1_w1z, d1_w1y, d1["b1"], d1_head, d1_head_b,
      cls_xd_w, cls_xd_b,
  )

  row_spec = lambda cols: pl.BlockSpec((tile_rows, cols), lambda i: (i, 0))
  const_spec = lambda arr: pl.BlockSpec(arr.shape, lambda i: (0, 0))

  kern = functools.partial(
      _fused_vae_kernel,
      n_cat=n_cat, n_latent=n_latent, n_rows=R, tile_rows=tile_rows,
      log_pc=float(-np.log(n_cat)))

  out = pl.pallas_call(
      kern,
      grid=(num_tiles,),
      in_specs=[
          row_spec(n_input),                                                 # x
          row_spec(n_latent),                                                # eps1
          pl.BlockSpec((1, n_cat * tile_rows, n_latent), lambda i: (i, 0, 0)),  # eps2
      ] + [const_spec(w) for w in weights],
      out_specs=pl.BlockSpec((8, 128), lambda i: (i, 0)),
      out_shape=jax.ShapeDtypeStruct((num_tiles * 8, 128), jnp.float32),
      compiler_params=pltpu.CompilerParams(
          dimension_semantics=("parallel",)),
  )(x_rows, eps1, eps2, *weights)

  # ELBO (unsupervised): loss = -((qc_z1 * log_ratio).sum(cat)).mean(samples, batch)
  tile_totals = out[::8, 0]                       # one scalar partial per tile
  loss = -jnp.sum(tile_totals) / float(n_samples * n_batch)
  return loss


if __name__ == "__main__":
  key = jax.random.PRNGKey(0)
  kp, kx, ks = jax.random.split(key, 3)

  n_input, n_labels, n_hidden, n_latent = 32, 4, 32, 8
  n_batch, n_samples = 4, 1

  params = init_params(kp, n_input, n_labels, n_hidden, n_latent)
  # Bernoulli likelihood over x => binary data
  x = (jax.random.uniform(kx, (n_batch, n_input)) > 0.5).astype(jnp.float32)

  loss = semi_supervised_vae_forward(x, params, ks, n_samples=n_samples)
  loss = jax.block_until_ready(loss)
  assert jnp.isfinite(loss)
  print("KERNEL_OK")
</pallas_src>

<mosaic_0001>
module attributes {stable_mosaic.version = 11 : i64} {
  func.func @_fused_vae_kernel(%arg0: i32, %arg1: memref<8x32xf32, #tpu.memory_space<vmem>>, %arg2: memref<8x8xf32, #tpu.memory_space<vmem>>, %arg3: memref<1x32x8xf32, #tpu.memory_space<vmem>>, %arg4: memref<32x32xbf16, #tpu.memory_space<vmem>>, %arg5: memref<1x32xf32, #tpu.memory_space<vmem>>, %arg6: memref<32x16xbf16, #tpu.memory_space<vmem>>, %arg7: memref<1x16xf32, #tpu.memory_space<vmem>>, %arg8: memref<8x32xbf16, #tpu.memory_space<vmem>>, %arg9: memref<4x32xf32, #tpu.memory_space<vmem>>, %arg10: memref<1x32xf32, #tpu.memory_space<vmem>>, %arg11: memref<32x16xbf16, #tpu.memory_space<vmem>>, %arg12: memref<1x16xf32, #tpu.memory_space<vmem>>, %arg13: memref<8x32xbf16, #tpu.memory_space<vmem>>, %arg14: memref<4x32xf32, #tpu.memory_space<vmem>>, %arg15: memref<1x32xf32, #tpu.memory_space<vmem>>, %arg16: memref<32x16xbf16, #tpu.memory_space<vmem>>, %arg17: memref<1x16xf32, #tpu.memory_space<vmem>>, %arg18: memref<8x36xbf16, #tpu.memory_space<vmem>>, %arg19: memref<1x36xf32, #tpu.memory_space<vmem>>, %arg20: memref<8x128xf32, #tpu.memory_space<vmem>>) attributes {dimension_semantics = [#tpu.dimension_semantics<parallel>], iteration_bounds = array<i64: 1>, scalar_prefetch = 0 : i64, scratch_operands = 0 : i64, tpu.core_type = #tpu.core_type<tc>, window_params = [{transform_indices = @transform_0, window_bounds = array<i64: 8, 32>}, {transform_indices = @transform_1, window_bounds = array<i64: 8, 8>}, {transform_indices = @transform_2, window_bounds = array<i64: 1, 32, 8>}, {pipeline_mode = #tpu.pipeline_mode<synchronous>, transform_indices = @transform_3, window_bounds = array<i64: 32, 32>}, {pipeline_mode = #tpu.pipeline_mode<synchronous>, transform_indices = @transform_4, window_bounds = array<i64: 1, 32>}, {pipeline_mode = #tpu.pipeline_mode<synchronous>, transform_indices = @transform_5, window_bounds = array<i64: 32, 16>}, {pipeline_mode = #tpu.pipeline_mode<synchronous>, transform_indices = @transform_6, window_bounds = array<i64: 1, 16>}, {pipeline_mode = #tpu.pipeline_mode<synchronous>, transform_indices = @transform_7, window_bounds = array<i64: 8, 32>}, {pipeline_mode = #tpu.pipeline_mode<synchronous>, transform_indices = @transform_8, window_bounds = array<i64: 4, 32>}, {pipeline_mode = #tpu.pipeline_mode<synchronous>, transform_indices = @transform_9, window_bounds = array<i64: 1, 32>}, {pipeline_mode = #tpu.pipeline_mode<synchronous>, transform_indices = @transform_10, window_bounds = array<i64: 32, 16>}, {pipeline_mode = #tpu.pipeline_mode<synchronous>, transform_indices = @transform_11, window_bounds = array<i64: 1, 16>}, {pipeline_mode = #tpu.pipeline_mode<synchronous>, transform_indices = @transform_12, window_bounds = array<i64: 8, 32>}, {pipeline_mode = #tpu.pipeline_mode<synchronous>, transform_indices = @transform_13, window_bounds = array<i64: 4, 32>}, {pipeline_mode = #tpu.pipeline_mode<synchronous>, transform_indices = @transform_14, window_bounds = array<i64: 1, 32>}, {pipeline_mode = #tpu.pipeline_mode<synchronous>, transform_indices = @transform_15, window_bounds = array<i64: 32, 16>}, {pipeline_mode = #tpu.pipeline_mode<synchronous>, transform_indices = @transform_16, window_bounds = array<i64: 1, 16>}, {pipeline_mode = #tpu.pipeline_mode<synchronous>, transform_indices = @transform_17, window_bounds = array<i64: 8, 36>}, {pipeline_mode = #tpu.pipeline_mode<synchronous>, transform_indices = @transform_18, window_bounds = array<i64: 1, 36>}, {transform_indices = @transform_19, window_bounds = array<i64: 8, 128>}]} {
    %c0 = arith.constant 0 : index
    %c0_0 = arith.constant 0 : index
    %0 = vector.load %arg1[%c0, %c0_0] : memref<8x32xf32, #tpu.memory_space<vmem>>, vector<8x32xf32>
    %c0_1 = arith.constant 0 : index
    %c0_2 = arith.constant 0 : index
    %1 = vector.load %arg2[%c0_1, %c0_2] : memref<8x8xf32, #tpu.memory_space<vmem>>, vector<8x8xf32>
    %c0_3 = arith.constant 0 : index
    %c0_4 = arith.constant 0 : index
    %c0_5 = arith.constant 0 : index
    %2 = vector.load %arg3[%c0_3, %c0_4, %c0_5] : memref<1x32x8xf32, #tpu.memory_space<vmem>>, vector<1x32x8xf32>
    %3 = vector.shape_cast %2 : vector<1x32x8xf32> to vector<32x8xf32>
    %4 = arith.truncf %0 : vector<8x32xf32> to vector<8x32xbf16>
    %c0_6 = arith.constant 0 : index
    %c0_7 = arith.constant 0 : index
    %5 = vector.load %arg4[%c0_6, %c0_7] : memref<32x32xbf16, #tpu.memory_space<vmem>>, vector<32x32xbf16>
    %cst = arith.constant dense<0.000000e+00> : vector<8x32xf32>
    %6 = tpu.matmul %4, %5, %cst {dimension_numbers = #tpu.dot_dimension_numbers<[1], [0], [0], [1], [0, 0, 1, 1], [], []>} : vector<8x32xbf16>, vector<32x32xbf16>, vector<8x32xf32> -> vector<8x32xf32>
    %c0_8 = arith.constant 0 : index
    %c0_9 = arith.constant 0 : index
    %7 = vector.load %arg5[%c0_8, %c0_9] : memref<1x32xf32, #tpu.memory_space<vmem>>, vector<1x32xf32>
    %8 = vector.broadcast %7 : vector<1x32xf32> to vector<8x32xf32>
    %9 = arith.addf %6, %8 : vector<8x32xf32>
    %cst_10 = arith.constant 0.000000e+00 : f32
    %10 = vector.broadcast %cst_10 : f32 to vector<8x32xf32>
    %11 = arith.maximumf %9, %10 : vector<8x32xf32>
    %12 = arith.truncf %11 : vector<8x32xf32> to vector<8x32xbf16>
    %c0_11 = arith.constant 0 : index
    %c0_12 = arith.constant 0 : index
    %13 = vector.load %arg6[%c0_11, %c0_12] : memref<32x16xbf16, #tpu.memory_space<vmem>>, vector<32x16xbf16>
    %cst_13 = arith.constant dense<0.000000e+00> : vector<8x16xf32>
    %14 = tpu.matmul %12, %13, %cst_13 {dimension_numbers = #tpu.dot_dimension_numbers<[1], [0], [0], [1], [0, 0, 1, 1], [], []>} : vector<8x32xbf16>, vector<32x16xbf16>, vector<8x16xf32> -> vector<8x16xf32>
    %c0_14 = arith.constant 0 : index
    %c0_15 = arith.constant 0 : index
    %15 = vector.load %arg7[%c0_14, %c0_15] : memref<1x16xf32, #tpu.memory_space<vmem>>, vector<1x16xf32>
    %16 = vector.broadcast %15 : vector<1x16xf32> to vector<8x16xf32>
    %17 = arith.addf %14, %16 : vector<8x16xf32>
    %18 = vector.extract_strided_slice %17 {offsets = [0, 0], sizes = [8, 8], strides = [1, 1]} : vector<8x16xf32> to vector<8x8xf32>
    %19 = vector.extract_strided_slice %17 {offsets = [0, 8], sizes = [8, 8], strides = [1, 1]} : vector<8x16xf32> to vector<8x8xf32>
    %cst_16 = arith.constant 5.000000e-01 : f32
    %20 = vector.broadcast %cst_16 : f32 to vector<8x8xf32>
    %21 = arith.mulf %20, %19 : vector<8x8xf32>
    %22 = math.exp %21 : vector<8x8xf32>
    %23 = arith.mulf %22, %1 : vector<8x8xf32>
    %24 = arith.addf %18, %23 : vector<8x8xf32>
    %25 = arith.truncf %24 : vector<8x8xf32> to vector<8x8xbf16>
    %cst_17 = arith.constant 5.000000e-01 : f32
    %26 = vector.broadcast %cst_17 : f32 to vector<8x8xf32>
    %27 = arith.mulf %26, %1 : vector<8x8xf32>
    %28 = arith.mulf %27, %1 : vector<8x8xf32>
    %cst_18 = arith.constant 5.000000e-01 : f32
    %29 = vector.broadcast %cst_18 : f32 to vector<8x8xf32>
    %30 = arith.mulf %29, %19 : vector<8x8xf32>
    %31 = arith.addf %28, %30 : vector<8x8xf32>
    %cst_19 = arith.constant dense<0.000000e+00> : vector<8xf32>
    %32 = vector.multi_reduction <add>, %31, %cst_19 [1] : vector<8x8xf32> to vector<8xf32>
    %33 = vector.shape_cast %32 : vector<8xf32> to vector<8x1xf32>
    %c0_20 = arith.constant 0 : index
    %c0_21 = arith.constant 0 : index
    %34 = vector.load %arg18[%c0_20, %c0_21] : memref<8x36xbf16, #tpu.memory_space<vmem>>, vector<8x36xbf16>
    %cst_22 = arith.constant dense<0.000000e+00> : vector<8x36xf32>
    %35 = tpu.matmul %25, %34, %cst_22 {dimension_numbers = #tpu.dot_dimension_numbers<[1], [0], [0], [1], [0, 0, 1, 1], [], []>} : vector<8x8xbf16>, vector<8x36xbf16>, vector<8x36xf32> -> vector<8x36xf32>
    %c0_23 = arith.constant 0 : index
    %c0_24 = arith.constant 0 : index
    %36 = vector.load %arg19[%c0_23, %c0_24] : memref<1x36xf32, #tpu.memory_space<vmem>>, vector<1x36xf32>
    %37 = vector.broadcast %36 : vector<1x36xf32> to vector<8x36xf32>
    %38 = arith.addf %35, %37 : vector<8x36xf32>
    %39 = vector.extract_strided_slice %38 {offsets = [0, 0], sizes = [8, 4], strides = [1, 1]} : vector<8x36xf32> to vector<8x4xf32>
    %40 = vector.extract_strided_slice %38 {offsets = [0, 4], sizes = [8, 32], strides = [1, 1]} : vector<8x36xf32> to vector<8x32xf32>
    %cst_25 = arith.constant dense<0xFF800000> : vector<8xf32>
    %41 = vector.multi_reduction <maximumf>, %39, %cst_25 [1] : vector<8x4xf32> to vector<8xf32>
    %42 = vector.shape_cast %41 : vector<8xf32> to vector<8x1xf32>
    %43 = vector.broadcast %42 : vector<8x1xf32> to vector<8x4xf32>
    %44 = arith.subf %39, %43 : vector<8x4xf32>
    %45 = math.exp %44 : vector<8x4xf32>
    %cst_26 = arith.constant dense<0.000000e+00> : vector<8xf32>
    %46 = vector.multi_reduction <add>, %45, %cst_26 [1] : vector<8x4xf32> to vector<8xf32>
    %47 = vector.shape_cast %46 : vector<8xf32> to vector<8x1xf32>
    %48 = math.log %47 : vector<8x1xf32>
    %49 = vector.broadcast %48 : vector<8x1xf32> to vector<8x4xf32>
    %50 = arith.subf %44, %49 : vector<8x4xf32>
    %51 = math.exp %50 : vector<8x4xf32>
    %cst_27 = arith.constant 0.000000e+00 : f32
    %52 = vector.broadcast %cst_27 : f32 to vector<8x32xf32>
    %53 = arith.maximumf %40, %52 : vector<8x32xf32>
    %54 = math.absf %40 : vector<8x32xf32>
    %cst_28 = arith.constant 0.000000e+00 : f32
    %55 = vector.broadcast %cst_28 : f32 to vector<8x32xf32>
    %56 = arith.subf %55, %54 : vector<8x32xf32>
    %57 = math.exp %56 : vector<8x32xf32>
    %cst_29 = arith.constant 1.000000e+00 : f32
    %58 = vector.broadcast %cst_29 : f32 to vector<8x32xf32>
    %59 = arith.addf %58, %57 : vector<8x32xf32>
    %60 = math.log %59 : vector<8x32xf32>
    %61 = arith.addf %53, %60 : vector<8x32xf32>
    %62 = arith.mulf %0, %40 : vector<8x32xf32>
    %63 = arith.subf %62, %61 : vector<8x32xf32>
    %cst_30 = arith.constant dense<0.000000e+00> : vector<8xf32>
    %64 = vector.multi_reduction <add>, %63, %cst_30 [1] : vector<8x32xf32> to vector<8xf32>
    %65 = vector.shape_cast %64 : vector<8xf32> to vector<8x1xf32>
    %c0_31 = arith.constant 0 : index
    %c0_32 = arith.constant 0 : index
    %66 = vector.load %arg8[%c0_31, %c0_32] : memref<8x32xbf16, #tpu.memory_space<vmem>>, vector<8x32xbf16>
    %cst_33 = arith.constant dense<0.000000e+00> : vector<8x32xf32>
    %67 = tpu.matmul %25, %66, %cst_33 {dimension_numbers = #tpu.dot_dimension_numbers<[1], [0], [0], [1], [0, 0, 1, 1], [], []>} : vector<8x8xbf16>, vector<8x32xbf16>, vector<8x32xf32> -> vector<8x32xf32>
    %c0_34 = arith.constant 0 : index
    %c0_35 = arith.constant 0 : index
    %68 = vector.load %arg10[%c0_34, %c0_35] : memref<1x32xf32, #tpu.memory_space<vmem>>, vector<1x32xf32>
    %69 = vector.broadcast %68 : vector<1x32xf32> to vector<8x32xf32>
    %70 = arith.addf %67, %69 : vector<8x32xf32>
    %71 = vector.shape_cast %70 : vector<8x32xf32> to vector<1x8x32xf32>
    %c0_36 = arith.constant 0 : index
    %c0_37 = arith.constant 0 : index
    %72 = vector.load %arg9[%c0_36, %c0_37] : memref<4x32xf32, #tpu.memory_space<vmem>>, vector<4x32xf32>
    %73 = vector.shape_cast %72 : vector<4x32xf32> to vector<4x1x32xf32>
    %74 = vector.broadcast %71 : vector<1x8x32xf32> to vector<4x8x32xf32>
    %75 = vector.broadcast %73 : vector<4x1x32xf32> to vector<4x8x32xf32>
    %76 = arith.addf %74, %75 : vector<4x8x32xf32>
    %cst_38 = arith.constant 0.000000e+00 : f32
    %77 = vector.broadcast %cst_38 : f32 to vector<4x8x32xf32>
    %78 = arith.maximumf %76, %77 : vector<4x8x32xf32>
    %79 = vector.shape_cast %78 : vector<4x8x32xf32> to vector<32x32xf32>
    %80 = arith.truncf %79 : vector<32x32xf32> to vector<32x32xbf16>
    %c0_39 = arith.constant 0 : index
    %c0_40 = arith.constant 0 : index
    %81 = vector.load %arg11[%c0_39, %c0_40] : memref<32x16xbf16, #tpu.memory_space<vmem>>, vector<32x16xbf16>
    %cst_41 = arith.constant dense<0.000000e+00> : vector<32x16xf32>
    %82 = tpu.matmul %80, %81, %cst_41 {dimension_numbers = #tpu.dot_dimension_numbers<[1], [0], [0], [1], [0, 0, 1, 1], [], []>} : vector<32x32xbf16>, vector<32x16xbf16>, vector<32x16xf32> -> vector<32x16xf32>
    %c0_42 = arith.constant 0 : index
    %c0_43 = arith.constant 0 : index
    %83 = vector.load %arg12[%c0_42, %c0_43] : memref<1x16xf32, #tpu.memory_space<vmem>>, vector<1x16xf32>
    %84 = vector.broadcast %83 : vector<1x16xf32> to vector<32x16xf32>
    %85 = arith.addf %82, %84 : vector<32x16xf32>
    %86 = vector.extract_strided_slice %85 {offsets = [0, 0], sizes = [32, 8], strides = [1, 1]} : vector<32x16xf32> to vector<32x8xf32>
    %87 = vector.extract_strided_slice %85 {offsets = [0, 8], sizes = [32, 8], strides = [1, 1]} : vector<32x16xf32> to vector<32x8xf32>
    %cst_44 = arith.constant 5.000000e-01 : f32
    %88 = vector.broadcast %cst_44 : f32 to vector<32x8xf32>
    %89 = arith.mulf %88, %87 : vector<32x8xf32>
    %90 = math.exp %89 : vector<32x8xf32>
    %91 = arith.mulf %90, %3 : vector<32x8xf32>
    %92 = arith.addf %86, %91 : vector<32x8xf32>
    %93 = arith.truncf %92 : vector<32x8xf32> to vector<32x8xbf16>
    %c0_45 = arith.constant 0 : index
    %c0_46 = arith.constant 0 : index
    %94 = vector.load %arg13[%c0_45, %c0_46] : memref<8x32xbf16, #tpu.memory_space<vmem>>, vector<8x32xbf16>
    %cst_47 = arith.constant dense<0.000000e+00> : vector<32x32xf32>
    %95 = tpu.matmul %93, %94, %cst_47 {dimension_numbers = #tpu.dot_dimension_numbers<[1], [0], [0], [1], [0, 0, 1, 1], [], []>} : vector<32x8xbf16>, vector<8x32xbf16>, vector<32x32xf32> -> vector<32x32xf32>
    %c0_48 = arith.constant 0 : index
    %c0_49 = arith.constant 0 : index
    %96 = vector.load %arg15[%c0_48, %c0_49] : memref<1x32xf32, #tpu.memory_space<vmem>>, vector<1x32xf32>
    %97 = vector.broadcast %96 : vector<1x32xf32> to vector<32x32xf32>
    %98 = arith.addf %95, %97 : vector<32x32xf32>
    %99 = vector.shape_cast %98 : vector<32x32xf32> to vector<4x8x32xf32>
    %c0_50 = arith.constant 0 : index
    %c0_51 = arith.constant 0 : index
    %100 = vector.load %arg14[%c0_50, %c0_51] : memref<4x32xf32, #tpu.memory_space<vmem>>, vector<4x32xf32>
    %101 = vector.shape_cast %100 : vector<4x32xf32> to vector<4x1x32xf32>
    %102 = vector.broadcast %101 : vector<4x1x32xf32> to vector<4x8x32xf32>
    %103 = arith.addf %99, %102 : vector<4x8x32xf32>
    %cst_52 = arith.constant 0.000000e+00 : f32
    %104 = vector.broadcast %cst_52 : f32 to vector<4x8x32xf32>
    %105 = arith.maximumf %103, %104 : vector<4x8x32xf32>
    %106 = vector.shape_cast %105 : vector<4x8x32xf32> to vector<32x32xf32>
    %107 = arith.truncf %106 : vector<32x32xf32> to vector<32x32xbf16>
    %c0_53 = arith.constant 0 : index
    %c0_54 = arith.constant 0 : index
    %108 = vector.load %arg16[%c0_53, %c0_54] : memref<32x16xbf16, #tpu.memory_space<vmem>>, vector<32x16xbf16>
    %cst_55 = arith.constant dense<0.000000e+00> : vector<32x16xf32>
    %109 = tpu.matmul %107, %108, %cst_55 {dimension_numbers = #tpu.dot_dimension_numbers<[1], [0], [0], [1], [0, 0, 1, 1], [], []>} : vector<32x32xbf16>, vector<32x16xbf16>, vector<32x16xf32> -> vector<32x16xf32>
    %c0_56 = arith.constant 0 : index
    %c0_57 = arith.constant 0 : index
    %110 = vector.load %arg17[%c0_56, %c0_57] : memref<1x16xf32, #tpu.memory_space<vmem>>, vector<1x16xf32>
    %111 = vector.broadcast %110 : vector<1x16xf32> to vector<32x16xf32>
    %112 = arith.addf %109, %111 : vector<32x16xf32>
    %113 = vector.extract_strided_slice %112 {offsets = [0, 0], sizes = [32, 8], strides = [1, 1]} : vector<32x16xf32> to vector<32x8xf32>
    %114 = vector.extract_strided_slice %112 {offsets = [0, 8], sizes = [32, 8], strides = [1, 1]} : vector<32x16xf32> to vector<32x8xf32>
    %115 = vector.shape_cast %24 : vector<8x8xf32> to vector<1x8x8xf32>
    %116 = vector.shape_cast %115 : vector<1x8x8xf32> to vector<1x8x8xf32>
    %117 = vector.broadcast %116 : vector<1x8x8xf32> to vector<4x8x8xf32>
    %118 = vector.shape_cast %117 : vector<4x8x8xf32> to vector<32x8xf32>
    %119 = arith.subf %118, %113 : vector<32x8xf32>
    %cst_58 = arith.constant -5.000000e-01 : f32
    %120 = vector.broadcast %cst_58 : f32 to vector<32x8xf32>
    %121 = arith.mulf %120, %92 : vector<32x8xf32>
    %122 = arith.mulf %121, %92 : vector<32x8xf32>
    %cst_59 = arith.constant 5.000000e-01 : f32
    %123 = vector.broadcast %cst_59 : f32 to vector<32x8xf32>
    %124 = arith.mulf %123, %3 : vector<32x8xf32>
    %125 = arith.mulf %124, %3 : vector<32x8xf32>
    %126 = arith.addf %122, %125 : vector<32x8xf32>
    %cst_60 = arith.constant 5.000000e-01 : f32
    %127 = vector.broadcast %cst_60 : f32 to vector<32x8xf32>
    %128 = arith.mulf %127, %87 : vector<32x8xf32>
    %129 = arith.addf %126, %128 : vector<32x8xf32>
    %cst_61 = arith.constant 5.000000e-01 : f32
    %130 = vector.broadcast %cst_61 : f32 to vector<32x8xf32>
    %131 = arith.mulf %130, %119 : vector<32x8xf32>
    %132 = arith.mulf %131, %119 : vector<32x8xf32>
    %cst_62 = arith.constant 0.000000e+00 : f32
    %133 = vector.broadcast %cst_62 : f32 to vector<32x8xf32>
    %134 = arith.subf %133, %114 : vector<32x8xf32>
    %135 = math.exp %134 : vector<32x8xf32>
    %136 = arith.mulf %132, %135 : vector<32x8xf32>
    %137 = arith.subf %129, %136 : vector<32x8xf32>
    %cst_63 = arith.constant 5.000000e-01 : f32
    %138 = vector.broadcast %cst_63 : f32 to vector<32x8xf32>
    %139 = arith.mulf %138, %114 : vector<32x8xf32>
    %140 = arith.subf %137, %139 : vector<32x8xf32>
    %cst_64 = arith.constant dense<0.000000e+00> : vector<32xf32>
    %141 = vector.multi_reduction <add>, %140, %cst_64 [1] : vector<32x8xf32> to vector<32xf32>
    %142 = vector.shape_cast %141 : vector<32xf32> to vector<32x1xf32>
    %cst_65 = arith.constant -1.38629436 : f32
    %143 = vector.broadcast %cst_65 : f32 to vector<8x4xf32>
    %144 = arith.subf %143, %50 : vector<8x4xf32>
    %145 = arith.mulf %51, %144 : vector<8x4xf32>
    %cst_66 = arith.constant dense<0.000000e+00> : vector<8xf32>
    %146 = vector.multi_reduction <add>, %145, %cst_66 [1] : vector<8x4xf32> to vector<8xf32>
    %147 = vector.shape_cast %146 : vector<8xf32> to vector<8x1xf32>
    %cst_67 = arith.constant 0.000000e+00 : f32
    %148 = vector.broadcast %cst_67 : f32 to vector<8x1xf32>
    %149 = vector.extract_strided_slice %51 {offsets = [0, 0], sizes = [8, 1], strides = [1, 1]} : vector<8x4xf32> to vector<8x1xf32>
    %150 = vector.extract_strided_slice %142 {offsets = [0, 0], sizes = [8, 1], strides = [1, 1]} : vector<32x1xf32> to vector<8x1xf32>
    %151 = arith.mulf %149, %150 : vector<8x1xf32>
    %152 = arith.addf %148, %151 : vector<8x1xf32>
    %153 = vector.extract_strided_slice %51 {offsets = [0, 1], sizes = [8, 1], strides = [1, 1]} : vector<8x4xf32> to vector<8x1xf32>
    %154 = vector.extract_strided_slice %142 {offsets = [8, 0], sizes = [8, 1], strides = [1, 1]} : vector<32x1xf32> to vector<8x1xf32>
    %155 = arith.mulf %153, %154 : vector<8x1xf32>
    %156 = arith.addf %152, %155 : vector<8x1xf32>
    %157 = vector.extract_strided_slice %51 {offsets = [0, 2], sizes = [8, 1], strides = [1, 1]} : vector<8x4xf32> to vector<8x1xf32>
    %158 = vector.extract_strided_slice %142 {offsets = [16, 0], sizes = [8, 1], strides = [1, 1]} : vector<32x1xf32> to vector<8x1xf32>
    %159 = arith.mulf %157, %158 : vector<8x1xf32>
    %160 = arith.addf %156, %159 : vector<8x1xf32>
    %161 = vector.extract_strided_slice %51 {offsets = [0, 3], sizes = [8, 1], strides = [1, 1]} : vector<8x4xf32> to vector<8x1xf32>
    %162 = vector.extract_strided_slice %142 {offsets = [24, 0], sizes = [8, 1], strides = [1, 1]} : vector<32x1xf32> to vector<8x1xf32>
    %163 = arith.mulf %161, %162 : vector<8x1xf32>
    %164 = arith.addf %160, %163 : vector<8x1xf32>
    %165 = arith.addf %65, %33 : vector<8x1xf32>
    %166 = arith.addf %165, %147 : vector<8x1xf32>
    %167 = arith.addf %166, %164 : vector<8x1xf32>
    %c8_i32 = arith.constant 8 : i32
    %168 = arith.muli %arg0, %c8_i32 : i32
    %169 = tpu.iota {dimensions = array<i32: 0>} : vector<8x1xi32>
    %170 = vector.broadcast %168 : i32 to vector<8x1xi32>
    %171 = arith.addi %170, %169 : vector<8x1xi32>
    %c4_i32 = arith.constant 4 : i32
    %172 = vector.broadcast %c4_i32 : i32 to vector<8x1xi32>
    %173 = arith.cmpi slt, %171, %172 : vector<8x1xi32>
    %174 = arith.extui %173 : vector<8x1xi1> to vector<8x1xi32>
    %175 = arith.sitofp %174 : vector<8x1xi32> to vector<8x1xf32>
    %176 = arith.mulf %167, %175 : vector<8x1xf32>
    %cst_68 = arith.constant dense<0.000000e+00> : vector<1xf32>
    %177 = vector.multi_reduction <add>, %176, %cst_68 [0] : vector<8x1xf32> to vector<1xf32>
    %178 = vector.shape_cast %177 : vector<1xf32> to vector<1x1xf32>
    %179 = vector.shape_cast %178 : vector<1x1xf32> to vector<1x1xf32>
    %180 = vector.broadcast %179 : vector<1x1xf32> to vector<8x128xf32>
    %c0_69 = arith.constant 0 : index
    %c0_70 = arith.constant 0 : index
    %181 = vector.load %arg20[%c0_69, %c0_70] : memref<8x128xf32, #tpu.memory_space<vmem>>, vector<8x128xf32>
    tpu.vector_store %arg20[%c0_69, %c0_70], %180 {strides = array<i32>} : memref<8x128xf32, #tpu.memory_space<vmem>>, vector<8x128xf32>,
    return
  }
  func.func @transform_0(%arg0: i32) -> (i32, i32) {
    %c0_i32 = arith.constant 0 : i32
    %c0_i32_0 = arith.constant 0 : i32
    return %arg0, %c0_i32 : i32, i32
  }
  func.func @transform_1(%arg0: i32) -> (i32, i32) {
    %c0_i32 = arith.constant 0 : i32
    %c0_i32_0 = arith.constant 0 : i32
    return %arg0, %c0_i32 : i32, i32
  }
  func.func @transform_2(%arg0: i32) -> (i32, i32, i32) {
    %c0_i32 = arith.constant 0 : i32
    %c0_i32_0 = arith.constant 0 : i32
    %c0_i32_1 = arith.constant 0 : i32
    return %arg0, %c0_i32, %c0_i32_0 : i32, i32, i32
  }
  func.func @transform_3(%arg0: i32) -> (i32, i32) {
    %c0_i32 = arith.constant 0 : i32
    %c0_i32_0 = arith.constant 0 : i32
    %c0_i32_1 = arith.constant 0 : i32
    return %c0_i32, %c0_i32_0 : i32, i32
  }
  func.func @transform_4(%arg0: i32) -> (i32, i32) {
    %c0_i32 = arith.constant 0 : i32
    %c0_i32_0 = arith.constant 0 : i32
    %c0_i32_1 = arith.constant 0 : i32
    return %c0_i32, %c0_i32_0 : i32, i32
  }
  func.func @transform_5(%arg0: i32) -> (i32, i32) {
    %c0_i32 = arith.constant 0 : i32
    %c0_i32_0 = arith.constant 0 : i32
    %c0_i32_1 = arith.constant 0 : i32
    return %c0_i32, %c0_i32_0 : i32, i32
  }
  func.func @transform_6(%arg0: i32) -> (i32, i32) {
    %c0_i32 = arith.constant 0 : i32
    %c0_i32_0 = arith.constant 0 : i32
    %c0_i32_1 = arith.constant 0 : i32
    return %c0_i32, %c0_i32_0 : i32, i32
  }
  func.func @transform_7(%arg0: i32) -> (i32, i32) {
    %c0_i32 = arith.constant 0 : i32
    %c0_i32_0 = arith.constant 0 : i32
    %c0_i32_1 = arith.constant 0 : i32
    return %c0_i32, %c0_i32_0 : i32, i32
  }
  func.func @transform_8(%arg0: i32) -> (i32, i32) {
    %c0_i32 = arith.constant 0 : i32
    %c0_i32_0 = arith.constant 0 : i32
    %c0_i32_1 = arith.constant 0 : i32
    return %c0_i32, %c0_i32_0 : i32, i32
  }
  func.func @transform_9(%arg0: i32) -> (i32, i32) {
    %c0_i32 = arith.constant 0 : i32
    %c0_i32_0 = arith.constant 0 : i32
    %c0_i32_1 = arith.constant 0 : i32
    return %c0_i32, %c0_i32_0 : i32, i32
  }
  func.func @transform_10(%arg0: i32) -> (i32, i32) {
    %c0_i32 = arith.constant 0 : i32
    %c0_i32_0 = arith.constant 0 : i32
    %c0_i32_1 = arith.constant 0 : i32
    return %c0_i32, %c0_i32_0 : i32, i32
  }
  func.func @transform_11(%arg0: i32) -> (i32, i32) {
    %c0_i32 = arith.constant 0 : i32
    %c0_i32_0 = arith.constant 0 : i32
    %c0_i32_1 = arith.constant 0 : i32
    return %c0_i32, %c0_i32_0 : i32, i32
  }
  func.func @transform_12(%arg0: i32) -> (i32, i32) {
    %c0_i32 = arith.constant 0 : i32
    %c0_i32_0 = arith.constant 0 : i32
    %c0_i32_1 = arith.constant 0 : i32
    return %c0_i32, %c0_i32_0 : i32, i32
  }
  func.func @transform_13(%arg0: i32) -> (i32, i32) {
    %c0_i32 = arith.constant 0 : i32
    %c0_i32_0 = arith.constant 0 : i32
    %c0_i32_1 = arith.constant 0 : i32
    return %c0_i32, %c0_i32_0 : i32, i32
  }
  func.func @transform_14(%arg0: i32) -> (i32, i32) {
    %c0_i32 = arith.constant 0 : i32
    %c0_i32_0 = arith.constant 0 : i32
    %c0_i32_1 = arith.constant 0 : i32
    return %c0_i32, %c0_i32_0 : i32, i32
  }
  func.func @transform_15(%arg0: i32) -> (i32, i32) {
    %c0_i32 = arith.constant 0 : i32
    %c0_i32_0 = arith.constant 0 : i32
    %c0_i32_1 = arith.constant 0 : i32
    return %c0_i32, %c0_i32_0 : i32, i32
  }
  func.func @transform_16(%arg0: i32) -> (i32, i32) {
    %c0_i32 = arith.constant 0 : i32
    %c0_i32_0 = arith.constant 0 : i32
    %c0_i32_1 = arith.constant 0 : i32
    return %c0_i32, %c0_i32_0 : i32, i32
  }
  func.func @transform_17(%arg0: i32) -> (i32, i32) {
    %c0_i32 = arith.constant 0 : i32
    %c0_i32_0 = arith.constant 0 : i32
    %c0_i32_1 = arith.constant 0 : i32
    return %c0_i32, %c0_i32_0 : i32, i32
  }
  func.func @transform_18(%arg0: i32) -> (i32, i32) {
    %c0_i32 = arith.constant 0 : i32
    %c0_i32_0 = arith.constant 0 : i32
    %c0_i32_1 = arith.constant 0 : i32
    return %c0_i32, %c0_i32_0 : i32, i32
  }
  func.func @transform_19(%arg0: i32) -> (i32, i32) {
    %c0_i32 = arith.constant 0 : i32
    %c0_i32_0 = arith.constant 0 : i32
    return %arg0, %c0_i32 : i32, i32
  }
}

</mosaic_0001>

<llo_original>
// kernel: semi_supervised_vae_forward.3
$region0: #{semi_supervised_vae_forward.3}
  #allocation0 [shape = 'u32[]', space=smem, size = 0x4, offset = 0x4, fixed_abs, tag = 'smem constant byte address 0x4 - core index']
  #allocation1 [shape = 'u32[72,128]{1,0:T(1,128)}', space=vmem, size = 0x9000, scoped, tag = 'internal scratch']
  %s0 = inlined_call_operand.vmem [shape: f32[8,32], index: 0, kind: input, shape index: {}]
  %s1 = inlined_call_operand.vmem [shape: f32[8,8], index: 1, kind: input, shape index: {}]
  %s2 = inlined_call_operand.vmem [shape: f32[1,32,8], index: 2, kind: input, shape index: {}]
  %s3 = inlined_call_operand.vmem [shape: bf16[32,32], index: 3, kind: input, shape index: {}]
  %s4 = inlined_call_operand.vmem [shape: f32[1,32], index: 4, kind: input, shape index: {}]
  %s5 = inlined_call_operand.vmem [shape: bf16[32,16], index: 5, kind: input, shape index: {}]
  %s6 = inlined_call_operand.vmem [shape: f32[1,16], index: 6, kind: input, shape index: {}]
  %s7 = inlined_call_operand.vmem [shape: bf16[8,32], index: 7, kind: input, shape index: {}]
  %s8 = inlined_call_operand.vmem [shape: f32[4,32], index: 8, kind: input, shape index: {}]
  %s9 = inlined_call_operand.vmem [shape: f32[1,32], index: 9, kind: input, shape index: {}]
  %s10 = inlined_call_operand.vmem [shape: bf16[32,16], index: 10, kind: input, shape index: {}]
  %s11 = inlined_call_operand.vmem [shape: f32[1,16], index: 11, kind: input, shape index: {}]
  %s12 = inlined_call_operand.vmem [shape: bf16[8,32], index: 12, kind: input, shape index: {}]
  %s13 = inlined_call_operand.vmem [shape: f32[4,32], index: 13, kind: input, shape index: {}]
  %s14 = inlined_call_operand.vmem [shape: f32[1,32], index: 14, kind: input, shape index: {}]
  %s15 = inlined_call_operand.vmem [shape: bf16[32,16], index: 15, kind: input, shape index: {}]
  %s16 = inlined_call_operand.vmem [shape: f32[1,16], index: 16, kind: input, shape index: {}]
  %s17 = inlined_call_operand.vmem [shape: bf16[8,36], index: 17, kind: input, shape index: {}]
  %s18 = inlined_call_operand.vmem [shape: f32[1,36], index: 18, kind: input, shape index: {}]
  %s19 = inlined_call_operand.vmem [shape: f32[8,128], index: 19, kind: output, shape index: {}]
  %s20 = sld [smem:[#allocation0]]
  $region86: #{semi_supervised_vae_forward.3} parent=0
    _
  %s22 = ssub.s32 1, %s20
  %s23 = scalar_select 0, %s22, %s20
  // Predicated region
  $region2: #{semi_supervised_vae_forward.3} parent=0 // pred_check
    _
  $region3: #{semi_supervised_vae_forward.3} parent=0 // pred_check_branch
    %25 = sbr.rel (0) target = $region5
  $region4: #{semi_supervised_vae_forward.3} parent=0 // pred_region
    _
  $region5: #{semi_supervised_vae_forward.3} parent=0 // pred_fallthru
    _
  // Predicated region
  $region6: #{semi_supervised_vae_forward.3} parent=0 // pred_check
    _
  $region7: #{semi_supervised_vae_forward.3} parent=0 // pred_check_branch
    %27 = sbr.rel (0) target = $region9
  $region8: #{semi_supervised_vae_forward.3} parent=0 // pred_region
    _
  $region9: #{semi_supervised_vae_forward.3} parent=0 // pred_fallthru
    _
  // Predicated region
  $region10: #{semi_supervised_vae_forward.3} parent=0 // pred_check
    _
  $region11: #{semi_supervised_vae_forward.3} parent=0 // pred_check_branch
    %29 = sbr.rel (0) target = $region13
  $region12: #{semi_supervised_vae_forward.3} parent=0 // pred_region
    _
  $region13: #{semi_supervised_vae_forward.3} parent=0 // pred_fallthru
    _
  // Predicated region
  $region14: #{semi_supervised_vae_forward.3} parent=0 // pred_check
    _
  $region15: #{semi_supervised_vae_forward.3} parent=0 // pred_check_branch
    %31 = sbr.rel (0) target = $region17
  $region16: #{semi_supervised_vae_forward.3} parent=0 // pred_region
    _
  $region17: #{semi_supervised_vae_forward.3} parent=0 // pred_fallthru
    _
  // Predicated region
  $region18: #{semi_supervised_vae_forward.3} parent=0 // pred_check
    _
  $region19: #{semi_supervised_vae_forward.3} parent=0 // pred_check_branch
    %33 = sbr.rel (0) target = $region21
  $region20: #{semi_supervised_vae_forward.3} parent=0 // pred_region
    _
  $region21: #{semi_supervised_vae_forward.3} parent=0 // pred_fallthru
    _
  // Predicated region
  $region22: #{semi_supervised_vae_forward.3} parent=0 // pred_check
    _
  $region23: #{semi_supervised_vae_forward.3} parent=0 // pred_check_branch
    %35 = sbr.rel (0) target = $region25
  $region24: #{semi_supervised_vae_forward.3} parent=0 // pred_region
    _
  $region25: #{semi_supervised_vae_forward.3} parent=0 // pred_fallthru
    _
  // Predicated region
  $region26: #{semi_supervised_vae_forward.3} parent=0 // pred_check
    _
  $region27: #{semi_supervised_vae_forward.3} parent=0 // pred_check_branch
    %37 = sbr.rel (0) target = $region29
  $region28: #{semi_supervised_vae_forward.3} parent=0 // pred_region
    _
  $region29: #{semi_supervised_vae_forward.3} parent=0 // pred_fallthru
    _
  // Predicated region
  $region30: #{semi_supervised_vae_forward.3} parent=0 // pred_check
    _
  $region31: #{semi_supervised_vae_forward.3} parent=0 // pred_check_branch
    %39 = sbr.rel (0) target = $region33
  $region32: #{semi_supervised_vae_forward.3} parent=0 // pred_region
    _
  $region33: #{semi_supervised_vae_forward.3} parent=0 // pred_fallthru
    _
  // Predicated region
  $region34: #{semi_supervised_vae_forward.3} parent=0 // pred_check
    _
  $region35: #{semi_supervised_vae_forward.3} parent=0 // pred_check_branch
    %41 = sbr.rel (0) target = $region37
  $region36: #{semi_supervised_vae_forward.3} parent=0 // pred_region
    _
  $region37: #{semi_supervised_vae_forward.3} parent=0 // pred_fallthru
    _
  // Predicated region
  $region38: #{semi_supervised_vae_forward.3} parent=0 // pred_check
    _
  $region39: #{semi_supervised_vae_forward.3} parent=0 // pred_check_branch
    %43 = sbr.rel (0) target = $region41
  $region40: #{semi_supervised_vae_forward.3} parent=0 // pred_region
    _
  $region41: #{semi_supervised_vae_forward.3} parent=0 // pred_fallthru
    _
  // Predicated region
  $region42: #{semi_supervised_vae_forward.3} parent=0 // pred_check
    _
  $region43: #{semi_supervised_vae_forward.3} parent=0 // pred_check_branch
    %45 = sbr.rel (0) target = $region45
  $region44: #{semi_supervised_vae_forward.3} parent=0 // pred_region
    _
  $region45: #{semi_supervised_vae_forward.3} parent=0 // pred_fallthru
    _
  // Predicated region
  $region46: #{semi_supervised_vae_forward.3} parent=0 // pred_check
    _
  $region47: #{semi_supervised_vae_forward.3} parent=0 // pred_check_branch
    %47 = sbr.rel (0) target = $region49
  $region48: #{semi_supervised_vae_forward.3} parent=0 // pred_region
    _
  $region49: #{semi_supervised_vae_forward.3} parent=0 // pred_fallthru
    _
  // Predicated region
  $region50: #{semi_supervised_vae_forward.3} parent=0 // pred_check
    _
  $region51: #{semi_supervised_vae_forward.3} parent=0 // pred_check_branch
    %49 = sbr.rel (0) target = $region53
  $region52: #{semi_supervised_vae_forward.3} parent=0 // pred_region
    _
  $region53: #{semi_supervised_vae_forward.3} parent=0 // pred_fallthru
    _
  // Predicated region
  $region54: #{semi_supervised_vae_forward.3} parent=0 // pred_check
    _
  $region55: #{semi_supervised_vae_forward.3} parent=0 // pred_check_branch
    %51 = sbr.rel (0) target = $region57
  $region56: #{semi_supervised_vae_forward.3} parent=0 // pred_region
    _
  $region57: #{semi_supervised_vae_forward.3} parent=0 // pred_fallthru
    _
  // Predicated region
  $region58: #{semi_supervised_vae_forward.3} parent=0 // pred_check
    _
  $region59: #{semi_supervised_vae_forward.3} parent=0 // pred_check_branch
    %53 = sbr.rel (0) target = $region61
  $region60: #{semi_supervised_vae_forward.3} parent=0 // pred_region
    _
  $region61: #{semi_supervised_vae_forward.3} parent=0 // pred_fallthru
    _
  // Predicated region
  $region62: #{semi_supervised_vae_forward.3} parent=0 // pred_check
    _
  $region63: #{semi_supervised_vae_forward.3} parent=0 // pred_check_branch
    %55 = sbr.rel (0) target = $region65
  $region64: #{semi_supervised_vae_forward.3} parent=0 // pred_region
    _
  $region65: #{semi_supervised_vae_forward.3} parent=0 // pred_fallthru
    _
  // Predicated region
  $region66: #{semi_supervised_vae_forward.3} parent=0 // pred_check
    _
  $region67: #{semi_supervised_vae_forward.3} parent=0 // pred_check_branch
    %57 = sbr.rel (0) target = $region69
  $region68: #{semi_supervised_vae_forward.3} parent=0 // pred_region
    _
  $region69: #{semi_supervised_vae_forward.3} parent=0 // pred_fallthru
    _
  // Predicated region
  $region70: #{semi_supervised_vae_forward.3} parent=0 // pred_check
    _
  $region71: #{semi_supervised_vae_forward.3} parent=0 // pred_check_branch
    %59 = sbr.rel (0) target = $region73
  $region72: #{semi_supervised_vae_forward.3} parent=0 // pred_region
    _
  $region73: #{semi_supervised_vae_forward.3} parent=0 // pred_fallthru
    _
  // Predicated region
  $region74: #{semi_supervised_vae_forward.3} parent=0 // pred_check
    _
  $region75: #{semi_supervised_vae_forward.3} parent=0 // pred_check_branch
    %61 = sbr.rel (0) target = $region77
  $region76: #{semi_supervised_vae_forward.3} parent=0 // pred_region
    _
  $region77: #{semi_supervised_vae_forward.3} parent=0 // pred_fallthru
    _
  %v63 = vld [vmem:[%s0] sm:$0xff]
  %v64 = vld [vmem:[%s1] sm:$0xff]
  %v65 = vld [vmem:[%s2] sm:$0xff]
  %v66 = vld [vmem:[%s2 + $0x8] sm:$0xff]
  %v67 = vld [vmem:[%s2 + $0x10] sm:$0xff]
  %v68 = vld [vmem:[%s2 + $0x18] sm:$0xff]
  %v69 = vpack.c.bf16 %v63, %v63
  %v70 = vld [vmem:[%s3] sm:$0xf]
  %v71 = vld [vmem:[%s3 + $0x4] sm:$0xf]
  %v72 = vld [vmem:[%s3 + $0x8] sm:$0xf]
  %v73 = vld [vmem:[%s3 + $0xc] sm:$0xf]
  %v74 = vld [vmem:[%s4] sm:$0x1]
  %v76 = vperm.slane %v74, 0
  %v82 = vunpack.c.l.b16 %v70
  %v83 = vunpack.c.l.b16 %v71
  %v84 = vunpack.c.l.b16 %v72
  %v85 = vunpack.c.l.b16 %v73
  %v86 = vpack.c.b16 %v83, %v82
  %v87 = vpack.c.b16 %v85, %v84
  %vm90 = vcmask 261120
  %v92 = vsel %vm90, %v69, 0
  %94 = vmatpush.bf16.msra.mxu0 0
  %95 = vmatpush.bf16.msra.mxu0 0
  %96 = vmatpush.bf16.msra.mxu0 0
  %97 = vmatpush.bf16.msra.mxu0 0
  %98 = vmatpush.bf16.msra.mxu0 0
  %99 = vmatpush.bf16.msra.mxu0 0
  %100 = vmatpush.bf16.msra.mxu0 %v87
  %101 = vmatpush.bf16.msra.mxu0 %v86
  %102 = vmatmul.bf16.gmra.mxu0 %v92
  %v103 = vpop.f32.mrf.mxu0
  %v104 = vadd.f32 %v76, %v103
  %v105 = vpop.f32.mrf.mxu0
  %106 = vdwg.mxu0
  %v107 = vmax.f32 %v104, 0.0
  %v108 = vpack.c.bf16 %v107, %v107
  %v109 = vld [vmem:[%s5] sm:$0xf]
  %v110 = vld [vmem:[%s5 + $0x4] sm:$0xf]
  %v111 = vld [vmem:[%s5 + $0x8] sm:$0xf]
  %v112 = vld [vmem:[%s5 + $0xc] sm:$0xf]
  %v113 = vld [vmem:[%s6] sm:$0x1]
  %v115 = vperm.slane %v113, 0
  %v121 = vunpack.c.l.b16 %v109
  %v122 = vunpack.c.l.b16 %v110
  %v123 = vunpack.c.l.b16 %v111
  %v124 = vunpack.c.l.b16 %v112
  %v125 = vpack.c.b16 %v122, %v121
  %v126 = vpack.c.b16 %v124, %v123
  %v130 = vsel %vm90, %v108, 0
  %132 = vmatpush.bf16.msra.mxu0 0
  %133 = vmatpush.bf16.msra.mxu0 0
  %134 = vmatpush.bf16.msra.mxu0 0
  %135 = vmatpush.bf16.msra.mxu0 0
  %136 = vmatpush.bf16.msra.mxu0 0
  %137 = vmatpush.bf16.msra.mxu0 0
  %138 = vmatpush.bf16.msra.mxu0 %v126
  %139 = vmatpush.bf16.msra.mxu0 %v125
  %140 = vmatmul.bf16.gmra.mxu0 %v130
  %v141 = vpop.f32.mrf.mxu0
  %v142 = vadd.f32 %v115, %v141
  %v143 = vpop.f32.mrf.mxu0
  %144 = vdwg.mxu0
  %v145 = vmul.f32 %v142, 0.5
  %v146 = vmul.f32 %v145, 1.442695
  %v147 = vpow.pop %v146
  %149 = vrot.lane.b32.xlu0 %v64, 8
  %v150 = vpop.permute.xlu0 %149
  %v152 = vmul.f32 %v147, %v150
  %154 = vrot.lane.b32.xlu0 %v152, 120
  %v155 = vpop.permute.xlu0 %154
  %v157 = vadd.f32 %v142, %v155
  %v158 = vpack.c.bf16 %v157, %v157
  %v159 = vmul.f32 %v64, 0.5
  %v160 = vmul.f32 %v159, %v64
  %162 = vrot.lane.b32.xlu0 %v145, 120
  %v163 = vpop.permute.xlu0 %162
  %v165 = vadd.f32 %v160, %v163
  %vm166 = vcmask 64512
  %v167 = vsel %vm166, %v165, 0.0
  %168 = vadd.xlane.f32.xlu0 %v167
  %v169 = vpop.xlane.xlu0 %168
  %v170 = vld [vmem:[%s17] sm:$0xf]
  %v171 = vld [vmem:[%s18] sm:$0x1]
  %v173 = vperm.slane %v171, 0
  %v176 = vsel %vm166, %v158, 0
  %vm178 = vcmask 1043456
  %v180 = vsel %vm178, %v170, 0
  %182 = vmatpush.bf16.msra.mxu0 0
  %183 = vmatpush.bf16.msra.mxu0 0
  %184 = vmatpush.bf16.msra.mxu0 0
  %185 = vmatpush.bf16.msra.mxu0 0
  %186 = vmatpush.bf16.msra.mxu0 0
  %187 = vmatpush.bf16.msra.mxu0 0
  %188 = vmatpush.bf16.msra.mxu0 0
  %189 = vmatpush.bf16.msra.mxu0 %v180
  %190 = vmatmul.bf16.gmra.mxu0 %v176
  %v191 = vpop.f32.mrf.mxu0
  %v192 = vadd.f32 %v173, %v191
  %v193 = vpop.f32.mrf.mxu0
  %194 = vdwg.mxu0
  %vm195 = vcmask 31744
  %v196 = vsel %vm195, %v192, -inf
  %197 = vmax.xlane.f32.xlu0 %v196
  %v198 = vpop.xlane.xlu0 %197
  %v199 = vsub.f32 %v192, %v198
  %v200 = vmul.f32 %v199, 1.442695
  %v201 = vpow.pop %v200
  %v202 = vsel %vm195, %v201, 0.0
  %203 = vadd.xlane.f32.xlu0 %v202
  %v204 = vpop.xlane.xlu0 %203
  %v205 = vlog2.pop %v204
  %v206 = vmul.f32 %v205, 0.6931472
  %v207 = vsub.f32 %v199, %v206
  %v208 = vmul.f32 %v207, 1.442695
  %v209 = vpow.pop %v208
  %v210 = vmax.f32 %v192, 0.0
  %v211 = vand.u32 2147483647, %v192
  %v212 = vsub.f32 0.0, %v211
  %v213 = vmul.f32 %v212, 1.442695
  %v214 = vpow.pop %v213
  %v215 = vadd.f32 %v214, 1.0
  %v216 = vlog2.pop %v215
  %v217 = vmul.f32 %v216, 0.6931472
  %v218 = vadd.f32 %v210, %v217
  %220 = vrot.lane.b32.xlu0 %v192, 124
  %v221 = vpop.permute.xlu0 %220
  %v223 = vmul.f32 %v63, %v221
  %225 = vrot.lane.b32.xlu0 %v218, 124
  %v226 = vpop.permute.xlu0 %225
  %v228 = vsub.f32 %v223, %v226
  %v229 = vsel %vm90, %v228, 0.0
  %230 = vadd.xlane.f32.xlu0 %v229
  %v231 = vpop.xlane.xlu0 %230
  %v232 = vld [vmem:[%s7] sm:$0xf]
  %v233 = vld [vmem:[%s9] sm:$0x1]
  %v235 = vperm.slane %v233, 0
  %v238 = vsel %vm178, %v232, 0
  %240 = vmatpush.bf16.msra.mxu0 0
  %241 = vmatpush.bf16.msra.mxu0 0
  %242 = vmatpush.bf16.msra.mxu0 0
  %243 = vmatpush.bf16.msra.mxu0 0
  %244 = vmatpush.bf16.msra.mxu0 0
  %245 = vmatpush.bf16.msra.mxu0 0
  %246 = vmatpush.bf16.msra.mxu0 0
  %247 = vmatpush.bf16.msra.mxu0 %v238
  %248 = vmatmul.bf16.gmra.mxu0 %v176
  %v249 = vpop.f32.mrf.mxu0
  %v250 = vadd.f32 %v235, %v249
  %v251 = vpop.f32.mrf.mxu0
  %252 = vdwg.mxu0
  %v253 = vld [vmem:[%s8] sm:$0xf]
  %v255 = vrot.slane %v253, 1
  %v256 = vrot.slane %v253, 2
  %v257 = vrot.slane %v253, 3
  %v258 = vperm.slane %v253, 0
  %v259 = vperm.slane %v255, 0
  %v260 = vperm.slane %v256, 0
  %v261 = vperm.slane %v257, 0
  %v266 = vadd.f32 %v250, %v258
  %v267 = vadd.f32 %v250, %v259
  %v268 = vadd.f32 %v250, %v260
  %v269 = vadd.f32 %v250, %v261
  %v270 = vmax.f32 %v266, 0.0
  %v271 = vmax.f32 %v267, 0.0
  %v272 = vmax.f32 %v268, 0.0
  %v273 = vmax.f32 %v269, 0.0
  %v274 = vpack.c.bf16 %v271, %v270
  %v275 = vpack.c.bf16 %v273, %v272
  %v276 = vld [vmem:[%s10] sm:$0xf]
  %v277 = vld [vmem:[%s10 + $0x4] sm:$0xf]
  %v278 = vld [vmem:[%s10 + $0x8] sm:$0xf]
  %v279 = vld [vmem:[%s10 + $0xc] sm:$0xf]
  %v280 = vld [vmem:[%s11] sm:$0x1]
  %v282 = vperm.slane %v280, 0
  %v288 = vunpack.c.l.b16 %v276
  %v289 = vunpack.c.l.b16 %v277
  %v290 = vunpack.c.l.b16 %v278
  %v291 = vunpack.c.l.b16 %v279
  %v292 = vpack.c.b16 %v289, %v288
  %v293 = vpack.c.b16 %v291, %v290
  %v297 = vsel %vm90, %v274, 0
  %v300 = vsel %vm90, %v275, 0
  %302 = vmatpush.bf16.msra.mxu0 0
  %303 = vmatpush.bf16.msra.mxu0 0
  %304 = vmatpush.bf16.msra.mxu0 0
  %305 = vmatpush.bf16.msra.mxu0 0
  %306 = vmatpush.bf16.msra.mxu0 0
  %307 = vmatpush.bf16.msra.mxu0 0
  %308 = vmatpush.bf16.msra.mxu0 %v293
  %309 = vmatpush.bf16.msra.mxu0 %v292
  %310 = vmatmul.bf16.gmra.mxu0 %v297
  %v311 = vpop.f32.mrf.mxu0
  %v312 = vadd.f32 %v282, %v311
  %v313 = vpop.f32.mrf.mxu0
  %v314 = vadd.f32 %v282, %v313
  %315 = vmatmul.bf16.gmra.mxu0 %v300
  %v316 = vpop.f32.mrf.mxu0
  %v317 = vadd.f32 %v282, %v316
  %v318 = vpop.f32.mrf.mxu0
  %v319 = vadd.f32 %v282, %v318
  %320 = vdwg.mxu0
  %v321 = vmul.f32 %v312, 0.5
  %v322 = vmul.f32 %v314, 0.5
  %v323 = vmul.f32 %v317, 0.5
  %v324 = vmul.f32 %v319, 0.5
  %v325 = vmul.f32 %v321, 1.442695
  %v326 = vpow.pop %v325
  %v327 = vmul.f32 %v322, 1.442695
  %v328 = vpow.pop %v327
  %v329 = vmul.f32 %v323, 1.442695
  %v330 = vpow.pop %v329
  %v331 = vmul.f32 %v324, 1.442695
  %v332 = vpow.pop %v331
  %337 = vrot.lane.b32.xlu0 %v65, 8
  %v338 = vpop.permute.xlu0 %337
  %339 = vrot.lane.b32.xlu0 %v66, 8
  %v340 = vpop.permute.xlu0 %339
  %341 = vrot.lane.b32.xlu0 %v67, 8
  %v342 = vpop.permute.xlu0 %341
  %343 = vrot.lane.b32.xlu0 %v68, 8
  %v344 = vpop.permute.xlu0 %343
  %v349 = vmul.f32 %v326, %v338
  %v350 = vmul.f32 %v328, %v340
  %v351 = vmul.f32 %v330, %v342
  %v352 = vmul.f32 %v332, %v344
  %357 = vrot.lane.b32.xlu0 %v349, 120
  %v358 = vpop.permute.xlu0 %357
  %359 = vrot.lane.b32.xlu0 %v350, 120
  %v360 = vpop.permute.xlu0 %359
  %361 = vrot.lane.b32.xlu0 %v351, 120
  %v362 = vpop.permute.xlu0 %361
  %363 = vrot.lane.b32.xlu0 %v352, 120
  %v364 = vpop.permute.xlu0 %363
  %v369 = vadd.f32 %v312, %v358
  %v370 = vadd.f32 %v314, %v360
  %v371 = vadd.f32 %v317, %v362
  %v372 = vadd.f32 %v319, %v364
  %v373 = vpack.c.bf16 %v370, %v369
  %v374 = vpack.c.bf16 %v372, %v371
  %v375 = vld [vmem:[%s12] sm:$0xf]
  %v376 = vld [vmem:[%s14] sm:$0x1]
  %v378 = vperm.slane %v376, 0
  %v381 = vsel %vm166, %v373, 0
  %v384 = vsel %vm166, %v374, 0
  %v387 = vsel %vm178, %v375, 0
  %389 = vmatpush.bf16.msra.mxu0 0
  %390 = vmatpush.bf16.msra.mxu0 0
  %391 = vmatpush.bf16.msra.mxu0 0
  %392 = vmatpush.bf16.msra.mxu0 0
  %393 = vmatpush.bf16.msra.mxu0 0
  %394 = vmatpush.bf16.msra.mxu0 0
  %395 = vmatpush.bf16.msra.mxu0 0
  %396 = vmatpush.bf16.msra.mxu0 %v387
  %397 = vmatmul.bf16.gmra.mxu0 %v381
  %v398 = vpop.f32.mrf.mxu0
  %v399 = vadd.f32 %v378, %v398
  %v400 = vpop.f32.mrf.mxu0
  %v401 = vadd.f32 %v378, %v400
  %402 = vmatmul.bf16.gmra.mxu0 %v384
  %v403 = vpop.f32.mrf.mxu0
  %v404 = vadd.f32 %v378, %v403
  %v405 = vpop.f32.mrf.mxu0
  %v406 = vadd.f32 %v378, %v405
  %407 = vdwg.mxu0
  %v408 = vld [vmem:[%s13] sm:$0xf]
  %v410 = vrot.slane %v408, 1
  %v411 = vrot.slane %v408, 2
  %v412 = vrot.slane %v408, 3
  %v413 = vperm.slane %v408, 0
  %v414 = vperm.slane %v410, 0
  %v415 = vperm.slane %v411, 0
  %v416 = vperm.slane %v412, 0
  %v421 = vadd.f32 %v399, %v413
  %v422 = vadd.f32 %v401, %v414
  %v423 = vadd.f32 %v404, %v415
  %v424 = vadd.f32 %v406, %v416
  %v425 = vmax.f32 %v421, 0.0
  %v426 = vmax.f32 %v422, 0.0
  %v427 = vmax.f32 %v423, 0.0
  %v428 = vmax.f32 %v424, 0.0
  %v429 = vpack.c.bf16 %v426, %v425
  %v430 = vpack.c.bf16 %v428, %v427
  %v431 = vld [vmem:[%s15] sm:$0xf]
  %v432 = vld [vmem:[%s15 + $0x4] sm:$0xf]
  %v433 = vld [vmem:[%s15 + $0x8] sm:$0xf]
  %v434 = vld [vmem:[%s15 + $0xc] sm:$0xf]
  %v435 = vld [vmem:[%s16] sm:$0x1]
  %v437 = vperm.slane %v435, 0
  %v443 = vunpack.c.l.b16 %v431
  %v444 = vunpack.c.l.b16 %v432
  %v445 = vunpack.c.l.b16 %v433
  %v446 = vunpack.c.l.b16 %v434
  %v447 = vpack.c.b16 %v444, %v443
  %v448 = vpack.c.b16 %v446, %v445
  %v452 = vsel %vm90, %v429, 0
  %v455 = vsel %vm90, %v430, 0
  %457 = vmatpush.bf16.msra.mxu0 0
  %458 = vmatpush.bf16.msra.mxu0 0
  %459 = vmatpush.bf16.msra.mxu0 0
  %460 = vmatpush.bf16.msra.mxu0 0
  %461 = vmatpush.bf16.msra.mxu0 0
  %462 = vmatpush.bf16.msra.mxu0 0
  %463 = vmatpush.bf16.msra.mxu0 %v448
  %464 = vmatpush.bf16.msra.mxu0 %v447
  %465 = vmatmul.bf16.gmra.mxu0 %v452
  %v466 = vpop.f32.mrf.mxu0
  %v467 = vadd.f32 %v437, %v466
  %v468 = vpop.f32.mrf.mxu0
  %v469 = vadd.f32 %v437, %v468
  %470 = vmatmul.bf16.gmra.mxu0 %v455
  %v471 = vpop.f32.mrf.mxu0
  %v472 = vadd.f32 %v437, %v471
  %v473 = vpop.f32.mrf.mxu0
  %v474 = vadd.f32 %v437, %v473
  %475 = vdwg.mxu0
  %v476 = vsub.f32 %v157, %v467
  %v477 = vsub.f32 %v157, %v469
  %v478 = vsub.f32 %v157, %v472
  %v479 = vsub.f32 %v157, %v474
  %v480 = vmul.f32 %v369, -0.5
  %v481 = vmul.f32 %v370, -0.5
  %v482 = vmul.f32 %v371, -0.5
  %v483 = vmul.f32 %v372, -0.5
  %v484 = vmul.f32 %v480, %v369
  %v485 = vmul.f32 %v481, %v370
  %v486 = vmul.f32 %v482, %v371
  %v487 = vmul.f32 %v483, %v372
  %v488 = vmul.f32 %v65, 0.5
  %v489 = vmul.f32 %v66, 0.5
  %v490 = vmul.f32 %v67, 0.5
  %v491 = vmul.f32 %v68, 0.5
  %v492 = vmul.f32 %v488, %v65
  %v493 = vmul.f32 %v489, %v66
  %v494 = vmul.f32 %v490, %v67
  %v495 = vmul.f32 %v491, %v68
  %v496 = vadd.f32 %v484, %v492
  %v497 = vadd.f32 %v485, %v493
  %v498 = vadd.f32 %v486, %v494
  %v499 = vadd.f32 %v487, %v495
  %504 = vrot.lane.b32.xlu0 %v321, 120
  %v505 = vpop.permute.xlu0 %504
  %506 = vrot.lane.b32.xlu0 %v322, 120
  %v507 = vpop.permute.xlu0 %506
  %508 = vrot.lane.b32.xlu0 %v323, 120
  %v509 = vpop.permute.xlu0 %508
  %510 = vrot.lane.b32.xlu0 %v324, 120
  %v511 = vpop.permute.xlu0 %510
  %v516 = vadd.f32 %v496, %v505
  %v517 = vadd.f32 %v497, %v507
  %v518 = vadd.f32 %v498, %v509
  %v519 = vadd.f32 %v499, %v511
  %v520 = vmul.f32 %v476, 0.5
  %v521 = vmul.f32 %v477, 0.5
  %v522 = vmul.f32 %v478, 0.5
  %v523 = vmul.f32 %v479, 0.5
  %v524 = vmul.f32 %v520, %v476
  %v525 = vmul.f32 %v521, %v477
  %v526 = vmul.f32 %v522, %v478
  %v527 = vmul.f32 %v523, %v479
  %v528 = vsub.f32 0.0, %v467
  %v529 = vsub.f32 0.0, %v469
  %v530 = vsub.f32 0.0, %v472
  %v531 = vsub.f32 0.0, %v474
  %v532 = vmul.f32 %v528, 1.442695
  %v533 = vpow.pop %v532
  %v534 = vmul.f32 %v529, 1.442695
  %v535 = vpow.pop %v534
  %v536 = vmul.f32 %v530, 1.442695
  %v537 = vpow.pop %v536
  %v538 = vmul.f32 %v531, 1.442695
  %v539 = vpow.pop %v538
  %544 = vrot.lane.b32.xlu0 %v533, 120
  %v545 = vpop.permute.xlu0 %544
  %546 = vrot.lane.b32.xlu0 %v535, 120
  %v547 = vpop.permute.xlu0 %546
  %548 = vrot.lane.b32.xlu0 %v537, 120
  %v549 = vpop.permute.xlu0 %548
  %550 = vrot.lane.b32.xlu0 %v539, 120
  %v551 = vpop.permute.xlu0 %550
  %v556 = vmul.f32 %v524, %v545
  %v557 = vmul.f32 %v525, %v547
  %v558 = vmul.f32 %v526, %v549
  %v559 = vmul.f32 %v527, %v551
  %v560 = vsub.f32 %v516, %v556
  %v561 = vsub.f32 %v517, %v557
  %v562 = vsub.f32 %v518, %v558
  %v563 = vsub.f32 %v519, %v559
  %v564 = vmul.f32 %v467, 0.5
  %v565 = vmul.f32 %v469, 0.5
  %v566 = vmul.f32 %v472, 0.5
  %v567 = vmul.f32 %v474, 0.5
  %572 = vrot.lane.b32.xlu0 %v564, 120
  %v573 = vpop.permute.xlu0 %572
  %574 = vrot.lane.b32.xlu0 %v565, 120
  %v575 = vpop.permute.xlu0 %574
  %576 = vrot.lane.b32.xlu0 %v566, 120
  %v577 = vpop.permute.xlu0 %576
  %578 = vrot.lane.b32.xlu0 %v567, 120
  %v579 = vpop.permute.xlu0 %578
  %v584 = vsub.f32 %v560, %v573
  %v585 = vsub.f32 %v561, %v575
  %v586 = vsub.f32 %v562, %v577
  %v587 = vsub.f32 %v563, %v579
  %v588 = vsel %vm166, %v584, 0.0
  %589 = vadd.xlane.f32.xlu0 %v588
  %v590 = vpop.xlane.xlu0 %589
  %v591 = vsel %vm166, %v585, 0.0
  %592 = vadd.xlane.f32.xlu0 %v591
  %v593 = vpop.xlane.xlu0 %592
  %v594 = vsel %vm166, %v586, 0.0
  %595 = vadd.xlane.f32.xlu0 %v594
  %v596 = vpop.xlane.xlu0 %595
  %v597 = vsel %vm166, %v587, 0.0
  %598 = vadd.xlane.f32.xlu0 %v597
  %v599 = vpop.xlane.xlu0 %598
  %v600 = vsub.f32 -1.3862944, %v207
  %v601 = vmul.f32 %v209, %v600
  %v602 = vsel %vm195, %v601, 0.0
  %603 = vadd.xlane.f32.xlu0 %v602
  %v604 = vpop.xlane.xlu0 %603
  %v605 = vmul.f32 %v209, %v590
  %v606 = vadd.f32 %v605, 0.0
  %v607 = vmul.f32 %v209, %v593
  %609 = vrot.lane.b32.xlu0 %v607, 127
  %v610 = vpop.permute.xlu0 %609
  %v612 = vadd.f32 %v606, %v610
  %v613 = vmul.f32 %v209, %v596
  %615 = vrot.lane.b32.xlu0 %v613, 126
  %v616 = vpop.permute.xlu0 %615
  %v618 = vadd.f32 %v612, %v616
  %v619 = vmul.f32 %v209, %v599
  %621 = vrot.lane.b32.xlu0 %v619, 125
  %v622 = vpop.permute.xlu0 %621
  %v624 = vadd.f32 %v618, %v622
  %v625 = vadd.f32 %v231, %v169
  %v626 = vadd.f32 %v625, %v604
  %v627 = vadd.f32 %v626, %v624
  %s628 = smul.u32 0, 8
  %v629 = vlaneseq
  %v630 = vshrl.u32 %v629, 7
  %v631 = vstv %s628
  %v632 = vadd.s32 %v631, %v630
  %vm633 = vcmp.lt.s32.totalorder %v632, 4
  %v634 = vsel %vm633, 1, 0
  %v635 = vcvt.s32.f32 %v634
  %v636 = vmul.f32 %v627, %v635
  %vm637 = vcmask 7168
  %v638 = vsel %vm637, %v636, 0.0
  %v639 = vrot.slane %v638, 4
  %v640 = vadd.f32 %v638, %v639
  %v641 = vrot.slane %v640, 2
  %v642 = vadd.f32 %v640, %v641
  %v643 = vrot.slane %v642, 1
  %v644 = vadd.f32 %v642, %v643
  %646 = vset.pattern.permute.xlu0 0
  %647 = vperm.xlu0 %646, %v644
  %v648 = vpop.permute.xlu0 %647
  %650 = vst [vmem:[%s19] sm:$0xff] %v648
  // Predicated region
  $region78: #{semi_supervised_vae_forward.3} parent=0 // pred_check
    _
  $region79: #{semi_supervised_vae_forward.3} parent=0 // pred_check_branch
    %652 = sbr.rel (0) target = $region81
  $region80: #{semi_supervised_vae_forward.3} parent=0 // pred_region
    _
  $region81: #{semi_supervised_vae_forward.3} parent=0 // pred_fallthru
    _
  // Predicated region
  $region82: #{semi_supervised_vae_forward.3} parent=0 // pred_check
    _
  $region83: #{semi_supervised_vae_forward.3} parent=0 // pred_check_branch
    %654 = sbr.rel (0) target = $region85
  $region84: #{semi_supervised_vae_forward.3} parent=0 // pred_region
    _
  $region85: #{semi_supervised_vae_forward.3} parent=0 // pred_fallthru
    _

</llo_original>
